<compile_context>
chip_gen: v7x
topology: tpu7x:2x2x1
jax: 0.10.0
libtpu: 0.0.40
codegen_flags: <defaults>
</compile_context>

<pallas_src>
import jax
import jax.numpy as jnp
from jax.experimental import pallas as pl
from jax.experimental.pallas import tpu as pltpu


# ------------------------------ Pallas kernel -------------------------------

def _se_kernel(x_ref, w1t_ref, b1_ref, w2_ref, b2_ref, o_ref):
    """Fused Squeeze-and-Excite for one batch element.

    x_ref  : (1, C, S)  input, channels on sublanes, spatial (S=T*F) on lanes
    w1t_ref: (C, M)     first Linear weight, transposed (M = C // divide)
    b1_ref : (1, M)     first Linear bias
    w2_ref : (C, M)     second Linear weight (PyTorch layout: out x in)
    b2_ref : (C, 1)     second Linear bias
    o_ref  : (1, C, S)  output = x * per-channel gate
    """
    xb = x_ref[0]                                        # (C, S), lane-dense

    # AdaptiveAvgPool2d(1): mean over the spatial (lane) axis.
    pooled = jnp.mean(xb, axis=1, keepdims=True)         # (C, 1)

    # FC1: h[m] = sum_c w1[m, c] * pooled[c] + b1[m]   (w1t is (C, M))
    h = jnp.sum(w1t_ref[...] * pooled, axis=0, keepdims=True) + b1_ref[...]  # (1, M)
    h = jnp.clip(h, 0.0, 6.0)                            # ReLU6

    # FC2: s[c] = sum_m w2[c, m] * h[m] + b2[c]
    s = jnp.sum(w2_ref[...] * h, axis=1, keepdims=True) + b2_ref[...]        # (C, 1)

    # HardSwish: s * relu6(s + 3) / 6
    s = s * jnp.clip(s + 3.0, 0.0, 6.0) * (1.0 / 6.0)

    # Channel-wise rescale of the input (broadcast (C,1) over lanes).
    o_ref[0] = (xb * s).astype(o_ref.dtype)


# --------------------------------- wrapper -----------------------------------

def squeeze_and_excite_forward(x_nchw, w1, b1, w2, b2):
    """x_nchw: (B, C, T, F); w1: (M, C); b1: (M,); w2: (C, M); b2: (C,)."""
    B, C, T, F = x_nchw.shape
    S = T * F
    M = w1.shape[0]

    # Layout plumbing in the wrapper (free, contiguous reshapes): fold spatial
    # dims into one lane-dense axis of length S = T*F.
    x2 = x_nchw.reshape(B, C, S)
    w1t = jnp.transpose(w1)          # (C, M)
    b1r = b1.reshape(1, M)
    b2r = b2.reshape(C, 1)

    out = pl.pallas_call(
        _se_kernel,
        out_shape=jax.ShapeDtypeStruct((B, C, S), x_nchw.dtype),
        grid_spec=pltpu.PrefetchScalarGridSpec(
            num_scalar_prefetch=0,
            grid=(B,),
            in_specs=[
                pl.BlockSpec((1, C, S), lambda b: (b, 0, 0)),
                pl.BlockSpec((C, M), lambda b: (0, 0)),
                pl.BlockSpec((1, M), lambda b: (0, 0)),
                pl.BlockSpec((C, M), lambda b: (0, 0)),
                pl.BlockSpec((C, 1), lambda b: (0, 0)),
            ],
            out_specs=pl.BlockSpec((1, C, S), lambda b: (b, 0, 0)),
        ),
        compiler_params=pltpu.CompilerParams(
            dimension_semantics=("parallel",)),
    )(x2, w1t, b1r, w2, b2r)

    return out.reshape(B, C, T, F)


# --------------------------- pure-JAX reference ------------------------------

def ref_forward(x, w1, b1, w2, b2):
    pooled = x.mean(axis=(2, 3))                         # (B, C)
    h = pooled @ w1.T + b1                               # (B, M)
    h = jnp.clip(h, 0.0, 6.0)                            # ReLU6
    s = h @ w2.T + b2                                    # (B, C)
    s = s * jnp.clip(s + 3.0, 0.0, 6.0) / 6.0            # HardSwish
    return x * s[:, :, None, None]


# ----------------------------------- main -------------------------------------

if __name__ == "__main__":
    B, C, T, F = 2, 16, 16, 16          # in_channels = out_channels = 16
    divide = 4
    M = C // divide                     # mid_channels = 4

    key = jax.random.PRNGKey(0)
    kx, k1, k2, k3, k4 = jax.random.split(key, 5)
    x = jax.random.normal(kx, (B, C, T, F), jnp.float32)          # NCHW input
    w1 = 0.3 * jax.random.normal(k1, (M, C), jnp.float32)         # Linear(C, M).weight
    b1 = 0.1 * jax.random.normal(k2, (M,), jnp.float32)
    w2 = 0.3 * jax.random.normal(k3, (C, M), jnp.float32)         # Linear(M, C).weight
    b2 = 0.1 * jax.random.normal(k4, (C,), jnp.float32)

    out = squeeze_and_excite_forward(x, w1, b1, w2, b2)
    out = jax.block_until_ready(out)

    ref = jax.block_until_ready(ref_forward(x, w1, b1, w2, b2))
    if not bool(jnp.allclose(out, ref, rtol=1e-4, atol=1e-4)):
        raise AssertionError("Pallas output does not match pure-JAX reference")

    print("KERNEL_OK")
</pallas_src>

<mosaic_0001>
module attributes {stable_mosaic.version = 11 : i64} {
  func.func @_se_kernel(%arg0: i32, %arg1: memref<1x16x256xf32, #tpu.memory_space<vmem>>, %arg2: memref<16x4xf32, #tpu.memory_space<vmem>>, %arg3: memref<1x4xf32, #tpu.memory_space<vmem>>, %arg4: memref<16x4xf32, #tpu.memory_space<vmem>>, %arg5: memref<16x1xf32, #tpu.memory_space<vmem>>, %arg6: memref<1x16x256xf32, #tpu.memory_space<vmem>>) attributes {dimension_semantics = [#tpu.dimension_semantics<parallel>], iteration_bounds = array<i64: 2>, scalar_prefetch = 0 : i64, scratch_operands = 0 : i64, tpu.core_type = #tpu.core_type<tc>, window_params = [{transform_indices = @transform_0, window_bounds = array<i64: 1, 16, 256>}, {pipeline_mode = #tpu.pipeline_mode<synchronous>, transform_indices = @transform_1, window_bounds = array<i64: 16, 4>}, {pipeline_mode = #tpu.pipeline_mode<synchronous>, transform_indices = @transform_2, window_bounds = array<i64: 1, 4>}, {pipeline_mode = #tpu.pipeline_mode<synchronous>, transform_indices = @transform_3, window_bounds = array<i64: 16, 4>}, {pipeline_mode = #tpu.pipeline_mode<synchronous>, transform_indices = @transform_4, window_bounds = array<i64: 16, 1>}, {transform_indices = @transform_5, window_bounds = array<i64: 1, 16, 256>}]} {
    %c0 = arith.constant 0 : index
    %c0_0 = arith.constant 0 : index
    %c0_1 = arith.constant 0 : index
    %0 = vector.load %arg1[%c0, %c0_0, %c0_1] : memref<1x16x256xf32, #tpu.memory_space<vmem>>, vector<1x16x256xf32>
    %1 = vector.shape_cast %0 : vector<1x16x256xf32> to vector<16x256xf32>
    %cst = arith.constant dense<0.000000e+00> : vector<16xf32>
    %2 = vector.multi_reduction <add>, %1, %cst [1] : vector<16x256xf32> to vector<16xf32>
    %3 = vector.shape_cast %2 : vector<16xf32> to vector<16x1xf32>
    %cst_2 = arith.constant 2.560000e+02 : f32
    %4 = vector.broadcast %cst_2 : f32 to vector<16x1xf32>
    %5 = arith.divf %3, %4 : vector<16x1xf32>
    %c0_3 = arith.constant 0 : index
    %c0_4 = arith.constant 0 : index
    %6 = vector.load %arg2[%c0_3, %c0_4] : memref<16x4xf32, #tpu.memory_space<vmem>>, vector<16x4xf32>
    %7 = vector.broadcast %5 : vector<16x1xf32> to vector<16x4xf32>
    %8 = arith.mulf %6, %7 : vector<16x4xf32>
    %cst_5 = arith.constant dense<0.000000e+00> : vector<4xf32>
    %9 = vector.multi_reduction <add>, %8, %cst_5 [0] : vector<16x4xf32> to vector<4xf32>
    %10 = vector.shape_cast %9 : vector<4xf32> to vector<1x4xf32>
    %c0_6 = arith.constant 0 : index
    %c0_7 = arith.constant 0 : index
    %11 = vector.load %arg3[%c0_6, %c0_7] : memref<1x4xf32, #tpu.memory_space<vmem>>, vector<1x4xf32>
    %12 = arith.addf %10, %11 : vector<1x4xf32>
    %cst_8 = arith.constant 0.000000e+00 : f32
    %cst_9 = arith.constant 6.000000e+00 : f32
    %13 = vector.broadcast %cst_8 : f32 to vector<1x4xf32>
    %14 = arith.maximumf %13, %12 : vector<1x4xf32>
    %15 = vector.broadcast %cst_9 : f32 to vector<1x4xf32>
    %16 = arith.minimumf %15, %14 : vector<1x4xf32>
    %c0_10 = arith.constant 0 : index
    %c0_11 = arith.constant 0 : index
    %17 = vector.load %arg4[%c0_10, %c0_11] : memref<16x4xf32, #tpu.memory_space<vmem>>, vector<16x4xf32>
    %18 = vector.broadcast %16 : vector<1x4xf32> to vector<16x4xf32>
    %19 = arith.mulf %17, %18 : vector<16x4xf32>
    %cst_12 = arith.constant dense<0.000000e+00> : vector<16xf32>
    %20 = vector.multi_reduction <add>, %19, %cst_12 [1] : vector<16x4xf32> to vector<16xf32>
    %21 = vector.shape_cast %20 : vector<16xf32> to vector<16x1xf32>
    %c0_13 = arith.constant 0 : index
    %c0_14 = arith.constant 0 : index
    %22 = vector.load %arg5[%c0_13, %c0_14] : memref<16x1xf32, #tpu.memory_space<vmem>>, vector<16x1xf32>
    %23 = arith.addf %21, %22 : vector<16x1xf32>
    %cst_15 = arith.constant 3.000000e+00 : f32
    %24 = vector.broadcast %cst_15 : f32 to vector<16x1xf32>
    %25 = arith.addf %23, %24 : vector<16x1xf32>
    %cst_16 = arith.constant 0.000000e+00 : f32
    %cst_17 = arith.constant 6.000000e+00 : f32
    %26 = vector.broadcast %cst_16 : f32 to vector<16x1xf32>
    %27 = arith.maximumf %26, %25 : vector<16x1xf32>
    %28 = vector.broadcast %cst_17 : f32 to vector<16x1xf32>
    %29 = arith.minimumf %28, %27 : vector<16x1xf32>
    %30 = arith.mulf %23, %29 : vector<16x1xf32>
    %cst_18 = arith.constant 0.166666672 : f32
    %31 = vector.broadcast %cst_18 : f32 to vector<16x1xf32>
    %32 = arith.mulf %30, %31 : vector<16x1xf32>
    %33 = vector.broadcast %32 : vector<16x1xf32> to vector<16x256xf32>
    %34 = arith.mulf %1, %33 : vector<16x256xf32>
    %c0_19 = arith.constant 0 : index
    %c0_20 = arith.constant 0 : index
    %c0_21 = arith.constant 0 : index
    %35 = vector.load %arg6[%c0_19, %c0_20, %c0_21] : memref<1x16x256xf32, #tpu.memory_space<vmem>>, vector<1x16x256xf32>
    %36 = vector.shape_cast %35 : vector<1x16x256xf32> to vector<16x256xf32>
    %37 = vector.shape_cast %34 : vector<16x256xf32> to vector<1x16x256xf32>
    tpu.vector_store %arg6[%c0_19, %c0_20, %c0_21], %37 {strides = array<i32>} : memref<1x16x256xf32, #tpu.memory_space<vmem>>, vector<1x16x256xf32>,
    return
  }
  func.func @transform_0(%arg0: i32) -> (i32, i32, i32) {
    %c0_i32 = arith.constant 0 : i32
    %c0_i32_0 = arith.constant 0 : i32
    %c0_i32_1 = arith.constant 0 : i32
    return %arg0, %c0_i32, %c0_i32_0 : i32, i32, i32
  }
  func.func @transform_1(%arg0: i32) -> (i32, i32) {
    %c0_i32 = arith.constant 0 : i32
    %c0_i32_0 = arith.constant 0 : i32
    %c0_i32_1 = arith.constant 0 : i32
    return %c0_i32, %c0_i32_0 : i32, i32
  }
  func.func @transform_2(%arg0: i32) -> (i32, i32) {
    %c0_i32 = arith.constant 0 : i32
    %c0_i32_0 = arith.constant 0 : i32
    %c0_i32_1 = arith.constant 0 : i32
    return %c0_i32, %c0_i32_0 : i32, i32
  }
  func.func @transform_3(%arg0: i32) -> (i32, i32) {
    %c0_i32 = arith.constant 0 : i32
    %c0_i32_0 = arith.constant 0 : i32
    %c0_i32_1 = arith.constant 0 : i32
    return %c0_i32, %c0_i32_0 : i32, i32
  }
  func.func @transform_4(%arg0: i32) -> (i32, i32) {
    %c0_i32 = arith.constant 0 : i32
    %c0_i32_0 = arith.constant 0 : i32
    %c0_i32_1 = arith.constant 0 : i32
    return %c0_i32, %c0_i32_0 : i32, i32
  }
  func.func @transform_5(%arg0: i32) -> (i32, i32, i32) {
    %c0_i32 = arith.constant 0 : i32
    %c0_i32_0 = arith.constant 0 : i32
    %c0_i32_1 = arith.constant 0 : i32
    return %arg0, %c0_i32, %c0_i32_0 : i32, i32, i32
  }
}

</mosaic_0001>

<llo_original>
// kernel: tpu_custom_call.1
$region0: #{tpu_custom_call.1}
  #allocation0 [shape = 'u32[]', space=smem, size = 0x4, offset = 0x4, fixed_abs, tag = 'smem constant byte address 0x4 - core index']
  #allocation1 [shape = 'u32[144,128]{1,0:T(1,128)}', space=vmem, size = 0x12000, scoped, tag = 'internal scratch']
  %s0 = inlined_call_operand.hbm [shape: f32[2,16,256], index: 0, kind: input, shape index: {}]
  %s1 = inlined_call_operand.vmem [shape: f32[16,4], index: 1, kind: input, shape index: {}]
  %s2 = inlined_call_operand.vmem [shape: f32[1,4], index: 2, kind: input, shape index: {}]
  %s3 = inlined_call_operand.vmem [shape: f32[16,4], index: 3, kind: input, shape index: {}]
  %s4 = inlined_call_operand.vmem [shape: f32[16,1], index: 4, kind: input, shape index: {}]
  %s5 = inlined_call_operand.hbm [shape: f32[2,16,256], index: 5, kind: output, shape index: {}]
  %s6 = sld [smem:[#allocation0]]
  $region57: #{tpu_custom_call.1} parent=0
    _
  %s8 = ssub.s32 1, %s6
  %s9 = scalar_select 0, %s8, %s6
  $region1: #{tpu_custom_call.1} parent=0
    #allocation2 [shape = 'u8[32768]{0}', space=vmem, size = 0x8000, scoped, tag = 'input window, operand 0']
    #allocation3 [shape = 's32[2]{0}', space=sflag, size = 0x8, scoped, tag = 'scoped memory for tpu_custom_call.1']
    #allocation4 [shape = 's32[2]{0}', space=sflag, size = 0x8, scoped, tag = 'scoped memory for tpu_custom_call.1']
    #allocation5 [shape = 'u8[32768]{0}', space=vmem, size = 0x8000, scoped, tag = 'output window, operand 0']
    %10 = vsyncpa [#allocation3], 0
    %s11 = scalar_lea.sflag [#allocation3], 1
    %12 = vsyncpa %s11, 0
    %13 = vsyncpa [#allocation4], 0
    %s14 = scalar_lea.sflag [#allocation4], 1
    %15 = vsyncpa %s14, 0
    loop: start=0, step=1, limit=4
    $region2: #{tpu_custom_call.1} parent=1 // loop_pre_header
      _
    $region3: #{tpu_custom_call.1} parent=1 // loop_header
      %s17 = sphi 0, %s21
      %p18 = scmp.ge.s32.totalorder %s17, 4
      %s27 = sphi 0, %s29
      %s30 = sphi 0, %s27
      %s31 = sphi 0, %s30
      %s47 = sphi 0, %s31
      %s51 = sphi 0, %s51
      %s53 = sphi 0, %s51
      %s54 = sphi 0, %s53
      %s68 = sphi 0, %s54
      %s72 = sphi 0, %s72
      %s74 = sphi 0, %s72
      %s75 = sphi 0, %s74
      %s89 = sphi 0, %s75
      %s93 = sphi 0, %s93
      %s95 = sphi 0, %s93
      %s96 = sphi 0, %s95
      %s110 = sphi 0, %s96
      %s114 = sphi 0, %s114
      %s116 = sphi 0, %s114
      %s117 = sphi 0, %s116
      %s131 = sphi 0, %s117
      %s137 = sphi 0, %s139
      %s140 = sphi 0, %s137
      %s141 = sphi 0, %s140
      %s157 = sphi 0, %s141
    $region4: #{tpu_custom_call.1} parent=1 // loop_header_branch
      %20 = sbr.rel (%p18) target = $region8
    $region5: #{tpu_custom_call.1} parent=1 // loop_body
      %s22 = ssub.s32 %s17, 1
      %s23 = ssub.s32 %s17, 2
      %s24 = sadd.s32 %s17, 1
      %s25 = ssub.s32 %s17, %s24
      %p26 = scmp.eq.s32.totalorder %s25, 0
      %s28 = sadd.s32 %s27, 1
      %s29 = scalar_select %p26, %s27, %s28
      %p32 = pneg %p26
      %p33 = scmp.eq.s32.totalorder %s17, 1
      %p34 = por %p32, %p33
      %p35 = scmp.ne.s32.totalorder %s27, %s30
      %p36 = scmp.eq.s32.totalorder %s17, 0
      %p37 = por %p35, %p36
      %p38 = scmp.ne.s32.totalorder %s27, %s30
      %p39 = scmp.eq.s32.totalorder %s22, 1
      %p40 = por %p38, %p39
      %p41 = scmp.ne.s32.totalorder %s30, %s31
      %p42 = scmp.eq.s32.totalorder %s22, 0
      %p43 = por %p41, %p42
      %p44 = scmp.ne.s32.totalorder %s30, %s31
      %p45 = scmp.eq.s32.totalorder %s23, 1
      %p46 = por %p44, %p45
      %p48 = scmp.ne.s32.totalorder %s31, %s47
      %p49 = scmp.eq.s32.totalorder %s23, 0
      %p50 = por %p48, %p49
      %s52 = sadd.s32 %s51, 1
      %p55 = scmp.eq.s32.totalorder %s17, 1
      %p56 = scmp.ne.s32.totalorder %s51, %s53
      %p57 = scmp.eq.s32.totalorder %s17, 0
      %p58 = por %p56, %p57
      %p59 = scmp.ne.s32.totalorder %s51, %s53
      %p60 = scmp.eq.s32.totalorder %s22, 1
      %p61 = por %p59, %p60
      %p62 = scmp.ne.s32.totalorder %s53, %s54
      %p63 = scmp.eq.s32.totalorder %s22, 0
      %p64 = por %p62, %p63
      %p65 = scmp.ne.s32.totalorder %s53, %s54
      %p66 = scmp.eq.s32.totalorder %s23, 1
      %p67 = por %p65, %p66
      %p69 = scmp.ne.s32.totalorder %s54, %s68
      %p70 = scmp.eq.s32.totalorder %s23, 0
      %p71 = por %p69, %p70
      %s73 = sadd.s32 %s72, 1
      %p76 = scmp.eq.s32.totalorder %s17, 1
      %p77 = scmp.ne.s32.totalorder %s72, %s74
      %p78 = scmp.eq.s32.totalorder %s17, 0
      %p79 = por %p77, %p78
      %p80 = scmp.ne.s32.totalorder %s72, %s74
      %p81 = scmp.eq.s32.totalorder %s22, 1
      %p82 = por %p80, %p81
      %p83 = scmp.ne.s32.totalorder %s74, %s75
      %p84 = scmp.eq.s32.totalorder %s22, 0
      %p85 = por %p83, %p84
      %p86 = scmp.ne.s32.totalorder %s74, %s75
      %p87 = scmp.eq.s32.totalorder %s23, 1
      %p88 = por %p86, %p87
      %p90 = scmp.ne.s32.totalorder %s75, %s89
      %p91 = scmp.eq.s32.totalorder %s23, 0
      %p92 = por %p90, %p91
      %s94 = sadd.s32 %s93, 1
      %p97 = scmp.eq.s32.totalorder %s17, 1
      %p98 = scmp.ne.s32.totalorder %s93, %s95
      %p99 = scmp.eq.s32.totalorder %s17, 0
      %p100 = por %p98, %p99
      %p101 = scmp.ne.s32.totalorder %s93, %s95
      %p102 = scmp.eq.s32.totalorder %s22, 1
      %p103 = por %p101, %p102
      %p104 = scmp.ne.s32.totalorder %s95, %s96
      %p105 = scmp.eq.s32.totalorder %s22, 0
      %p106 = por %p104, %p105
      %p107 = scmp.ne.s32.totalorder %s95, %s96
      %p108 = scmp.eq.s32.totalorder %s23, 1
      %p109 = por %p107, %p108
      %p111 = scmp.ne.s32.totalorder %s96, %s110
      %p112 = scmp.eq.s32.totalorder %s23, 0
      %p113 = por %p111, %p112
      %s115 = sadd.s32 %s114, 1
      %p118 = scmp.eq.s32.totalorder %s17, 1
      %p119 = scmp.ne.s32.totalorder %s114, %s116
      %p120 = scmp.eq.s32.totalorder %s17, 0
      %p121 = por %p119, %p120
      %p122 = scmp.ne.s32.totalorder %s114, %s116
      %p123 = scmp.eq.s32.totalorder %s22, 1
      %p124 = por %p122, %p123
      %p125 = scmp.ne.s32.totalorder %s116, %s117
      %p126 = scmp.eq.s32.totalorder %s22, 0
      %p127 = por %p125, %p126
      %p128 = scmp.ne.s32.totalorder %s116, %s117
      %p129 = scmp.eq.s32.totalorder %s23, 1
      %p130 = por %p128, %p129
      %p132 = scmp.ne.s32.totalorder %s117, %s131
      %p133 = scmp.eq.s32.totalorder %s23, 0
      %p134 = por %p132, %p133
      %s135 = ssub.s32 %s17, %s24
      %p136 = scmp.eq.s32.totalorder %s135, 0
      %s138 = sadd.s32 %s137, 1
      %s139 = scalar_select %p136, %s137, %s138
      %p142 = pneg %p136
      %p143 = scmp.eq.s32.totalorder %s17, 1
      %p144 = por %p142, %p143
      %p145 = scmp.ne.s32.totalorder %s137, %s140
      %p146 = scmp.eq.s32.totalorder %s17, 0
      %p147 = por %p145, %p146
      %p148 = scmp.ne.s32.totalorder %s137, %s140
      %p149 = scmp.eq.s32.totalorder %s22, 1
      %p150 = por %p148, %p149
      %p151 = scmp.ne.s32.totalorder %s140, %s141
      %p152 = scmp.eq.s32.totalorder %s22, 0
      %p153 = por %p151, %p152
      %p154 = scmp.ne.s32.totalorder %s140, %s141
      %p155 = scmp.eq.s32.totalorder %s23, 1
      %p156 = por %p154, %p155
      %p158 = scmp.ne.s32.totalorder %s141, %s157
      %p159 = scmp.eq.s32.totalorder %s23, 0
      %p160 = por %p158, %p159
      %p161 = scmp.le.s32.totalorder 1, %s17
      %p162 = scmp.lt.s32.totalorder %s17, 3
      %p163 = pnand %p161, %p162
      %p164 = pneg %p163
      // Predicated region
      $region9: #{tpu_custom_call.1} parent=5 // pred_check
        _
      $region10: #{tpu_custom_call.1} parent=5 // pred_check_branch
        %166 = sbr.rel (%p163) target = $region12
      $region11: #{tpu_custom_call.1} parent=5 // pred_region
        %s167 = ssub.s32 %s17, 1
        // Predicated region
        $region13: #{tpu_custom_call.1} parent=11 // pred_check
          %p168 = pneg %p64
        $region14: #{tpu_custom_call.1} parent=11 // pred_check_branch
          %170 = sbr.rel (%p168) target = $region16
        $region15: #{tpu_custom_call.1} parent=11 // pred_region
          _
        $region16: #{tpu_custom_call.1} parent=11 // pred_fallthru
          _
        // Predicated region
        $region17: #{tpu_custom_call.1} parent=11 // pred_check
          %p171 = pneg %p85
        $region18: #{tpu_custom_call.1} parent=11 // pred_check_branch
          %173 = sbr.rel (%p171) target = $region20
        $region19: #{tpu_custom_call.1} parent=11 // pred_region
          _
        $region20: #{tpu_custom_call.1} parent=11 // pred_fallthru
          _
        // Predicated region
        $region21: #{tpu_custom_call.1} parent=11 // pred_check
          %p174 = pneg %p106
        $region22: #{tpu_custom_call.1} parent=11 // pred_check_branch
          %176 = sbr.rel (%p174) target = $region24
        $region23: #{tpu_custom_call.1} parent=11 // pred_region
          _
        $region24: #{tpu_custom_call.1} parent=11 // pred_fallthru
          _
        // Predicated region
        $region25: #{tpu_custom_call.1} parent=11 // pred_check
          %p177 = pneg %p127
        $region26: #{tpu_custom_call.1} parent=11 // pred_check_branch
          %179 = sbr.rel (%p177) target = $region28
        $region27: #{tpu_custom_call.1} parent=11 // pred_region
          _
        $region28: #{tpu_custom_call.1} parent=11 // pred_fallthru
          _
      $region12: #{tpu_custom_call.1} parent=5 // pred_fallthru
        _
      %p180 = scmp.lt.s32.totalorder %s17, 2
      // Predicated region
      $region29: #{tpu_custom_call.1} parent=5 // pred_check
        %p181 = pneg %p180
      $region30: #{tpu_custom_call.1} parent=5 // pred_check_branch
        %183 = sbr.rel (%p181) target = $region32
      $region31: #{tpu_custom_call.1} parent=5 // pred_region
        // Predicated region
        $region33: #{tpu_custom_call.1} parent=31 // pred_check
          %p184 = pneg %p37
        $region34: #{tpu_custom_call.1} parent=31 // pred_check_branch
          %186 = sbr.rel (%p184) target = $region36
        $region35: #{tpu_custom_call.1} parent=31 // pred_region
          %s187 = sand.u32 %s27, 1
          %s188 = scalar_lea.sflag [#allocation3], %s187
          %s189 = sand.u32 %s27, 1
          %s190 = smul.addr %s189, 32
          %s191 = scalar_lea.vmem [#allocation2], %s190
          %s193 = ssub.s32 512, 512
          %194 = vsyncadd %s188, %s193
          %s195 = smul.addr %s17, 4
          %s196 = smul.addr %s195, 128
          %s197 = scalar_lea.hbm %s0, %s196
          %s198 = sshll.u32 %s191, 4
          %s199 = int_to_ptr.vmem [resolvable:$true] %s198
          %204 = dma.hbm_to_vmem [thread:$0]  %s197, 512, %s199, %s188, 256, 256, 16
        $region36: #{tpu_custom_call.1} parent=31 // pred_fallthru
          _
      $region32: #{tpu_custom_call.1} parent=5 // pred_fallthru
        _
      %p205 = scmp.le.s32.totalorder 1, %s17
      %p206 = scmp.lt.s32.totalorder %s17, 3
      %p207 = pnand %p205, %p206
      %p208 = pneg %p207
      // Predicated region
      $region37: #{tpu_custom_call.1} parent=5 // pred_check
        _
      $region38: #{tpu_custom_call.1} parent=5 // pred_check_branch
        %210 = sbr.rel (%p207) target = $region40
      $region39: #{tpu_custom_call.1} parent=5 // pred_region
        %s211 = ssub.s32 %s17, 1
        %s212 = sand.u32 %s30, 1
        %s213 = scalar_lea.sflag [#allocation3], %s212
        %s214 = sand.u32 %s30, 1
        %s215 = smul.addr %s214, 32
        %s216 = scalar_lea.vmem [#allocation2], %s215
        // Predicated region
        $region41: #{tpu_custom_call.1} parent=39 // pred_check
          %p217 = pneg %p43
        $region42: #{tpu_custom_call.1} parent=39 // pred_check_branch
          %219 = sbr.rel (%p217) target = $region44
        $region43: #{tpu_custom_call.1} parent=39 // pred_region
          %220 = dma.done %s213, 512
        $region44: #{tpu_custom_call.1} parent=39 // pred_fallthru
          _
        %s221 = sand.u32 %s30, 1
        %s222 = scalar_lea.sflag [#allocation3], %s221
        %s223 = sand.u32 %s30, 1
        %s224 = smul.addr %s223, 32
        %s225 = scalar_lea.vmem [#allocation2], %s224
        %p226 = pneg %p43
        %p227 = pneg %p40
        %p228 = pneg %p64
        %p229 = pneg %p61
        %p230 = pneg %p85
        %p231 = pneg %p82
        %p232 = pneg %p106
        %p233 = pneg %p103
        %p234 = pneg %p127
        %p235 = pneg %p124
        %p236 = pneg %p153
        %p237 = pneg %p150
        %s238 = sand.u32 %s140, 1
        %s239 = scalar_lea.sflag [#allocation4], %s238
        %s240 = sand.u32 %s140, 1
        %s241 = smul.addr %s240, 32
        %s242 = scalar_lea.vmem [#allocation5], %s241
        %v243 = vld [vmem:[%s216] sm:$0xff]
        %v244 = vld [vmem:[%s216 + $0x8] sm:$0xff]
        %v245 = vld [vmem:[%s216 + $0x10] sm:$0xff]
        %v246 = vld [vmem:[%s216 + $0x18] sm:$0xff]
        %v247 = vadd.f32 %v243, %v244
        %248 = vadd.xlane.f32.xlu0 %v247
        %v249 = vpop.xlane.xlu0 %248
        %v250 = vadd.f32 %v245, %v246
        %251 = vadd.xlane.f32.xlu0 %v250
        %v252 = vpop.xlane.xlu0 %251
        %v253 = vrcp.pop 256.0
        %v254 = vmul.f32 %v249, %v253
        %v255 = vmul.f32 %v252, %v253
        %v256 = vld [vmem:[%s1] sm:$0xff]
        %v257 = vld [vmem:[%s1 + $0x8] sm:$0xff]
        %v258 = vmul.f32 %v256, %v254
        %v259 = vmul.f32 %v257, %v255
        %vm260 = vcmask 31744
        %v261 = vsel %vm260, %v258, 0.0
        %v262 = vsel %vm260, %v259, 0.0
        %v263 = vadd.f32 %v261, %v262
        %v264 = vrot.slane %v263, 4
        %v265 = vadd.f32 %v263, %v264
        %v266 = vrot.slane %v265, 2
        %v267 = vadd.f32 %v265, %v266
        %v268 = vrot.slane %v267, 1
        %v269 = vadd.f32 %v267, %v268
        %v270 = vld [vmem:[%s2] sm:$0x1]
        %v271 = vadd.f32 %v269, %v270
        %v272 = vmax.f32 %v271, 0.0
        %v273 = vmin.f32 %v272, 6.0
        %v274 = vld [vmem:[%s3] sm:$0xff]
        %v275 = vld [vmem:[%s3 + $0x8] sm:$0xff]
        %v276 = vlaneseq
        %v277 = vshrl.u32 %v276, 7
        %v278 = vsub.s32 0, %v277
        %v279 = vrot.slane %v273, %v278
        %v280 = vmul.f32 %v274, %v279
        %v281 = vmul.f32 %v275, %v279
        %v282 = vsel %vm260, %v280, 0.0
        %283 = vadd.xlane.f32.xlu0 %v282
        %v284 = vpop.xlane.xlu0 %283
        %v285 = vsel %vm260, %v281, 0.0
        %286 = vadd.xlane.f32.xlu0 %v285
        %v287 = vpop.xlane.xlu0 %286
        %v288 = vld [vmem:[%s4] sm:$0xff]
        %v289 = vld [vmem:[%s4 + $0x8] sm:$0xff]
        %v290 = vadd.f32 %v284, %v288
        %v291 = vadd.f32 %v287, %v289
        %v292 = vadd.f32 %v290, 3.0
        %v293 = vadd.f32 %v291, 3.0
        %v294 = vmax.f32 %v292, 0.0
        %v295 = vmax.f32 %v293, 0.0
        %v296 = vmin.f32 %v294, 6.0
        %v297 = vmin.f32 %v295, 6.0
        %v298 = vmul.f32 %v290, %v296
        %v299 = vmul.f32 %v291, %v297
        %v300 = vmul.f32 %v298, 0.16666667
        %v301 = vmul.f32 %v299, 0.16666667
        %303 = vset.pattern.permute.xlu0 0
        %304 = vperm.xlu0 %303, %v300
        %v305 = vpop.permute.xlu0 %304
        %308 = vset.pattern.permute.xlu0 0
        %309 = vperm.xlu0 %308, %v301
        %v310 = vpop.permute.xlu0 %309
        %v312 = vmul.f32 %v243, %v305
        %v313 = vmul.f32 %v244, %v305
        %v314 = vmul.f32 %v245, %v310
        %v315 = vmul.f32 %v246, %v310
        %316 = vst [vmem:[%s242] sm:$0xff] %v312
        %317 = vst [vmem:[%s242 + $0x8] sm:$0xff] %v313
        %318 = vst [vmem:[%s242 + $0x10] sm:$0xff] %v314
        %319 = vst [vmem:[%s242 + $0x18] sm:$0xff] %v315
        %s320 = sand.u32 %s140, 1
        %s321 = scalar_lea.sflag [#allocation4], %s320
        %s322 = sand.u32 %s140, 1
        %s323 = smul.addr %s322, 32
        %s324 = scalar_lea.vmem [#allocation5], %s323
        // Predicated region
        $region45: #{tpu_custom_call.1} parent=39 // pred_check
          %p325 = pneg %p150
        $region46: #{tpu_custom_call.1} parent=39 // pred_check_branch
          %327 = sbr.rel (%p325) target = $region48
        $region47: #{tpu_custom_call.1} parent=39 // pred_region
          %s329 = ssub.s32 512, 512
          %330 = vsyncadd %s321, %s329
          %s331 = smul.addr %s22, 4
          %s332 = smul.addr %s331, 128
          %s333 = scalar_lea.hbm %s5, %s332
          %s334 = sshll.u32 %s324, 4
          %s335 = int_to_ptr.vmem [resolvable:$true] %s334
          %340 = dma.vmem_to_hbm [thread:$0]  %s335, 512, %s333, %s321, 256, 256, 16
        $region48: #{tpu_custom_call.1} parent=39 // pred_fallthru
          _
      $region40: #{tpu_custom_call.1} parent=5 // pred_fallthru
        _
      %p341 = scmp.le.s32.totalorder 2, %s17
      // Predicated region
      $region49: #{tpu_custom_call.1} parent=5 // pred_check
        %p342 = pneg %p341
      $region50: #{tpu_custom_call.1} parent=5 // pred_check_branch
        %344 = sbr.rel (%p342) target = $region52
      $region51: #{tpu_custom_call.1} parent=5 // pred_region
        %s345 = ssub.s32 %s17, 2
        // Predicated region
        $region53: #{tpu_custom_call.1} parent=51 // pred_check
          %p346 = pneg %p156
        $region54: #{tpu_custom_call.1} parent=51 // pred_check_branch
          %348 = sbr.rel (%p346) target = $region56
        $region55: #{tpu_custom_call.1} parent=51 // pred_region
          %s349 = sand.u32 %s141, 1
          %s350 = scalar_lea.sflag [#allocation4], %s349
          %s351 = sand.u32 %s141, 1
          %s352 = smul.addr %s351, 32
          %s353 = scalar_lea.vmem [#allocation5], %s352
          %354 = dma.done %s350, 512
        $region56: #{tpu_custom_call.1} parent=51 // pred_fallthru
          _
      $region52: #{tpu_custom_call.1} parent=5 // pred_fallthru
        _
    $region6: #{tpu_custom_call.1} parent=1 // loop_footer
      %s21 = sadd.s32 1, %s17
    $region7: #{tpu_custom_call.1} parent=1 // loop_footer_branch
      %16 = sbr.rel target = $region3
    $region8: #{tpu_custom_call.1} parent=1 // loop_exit
      _
    %355 = vsyncpa [#allocation3], 1
    %s356 = scalar_lea.sflag [#allocation3], 1
    %357 = vsyncpa %s356, 1
    %358 = vsyncpa [#allocation4], 1
    %s359 = scalar_lea.sflag [#allocation4], 1
    %360 = vsyncpa %s359, 1

</llo_original>
